<compile_context>
chip_gen: v6e
topology: v6e:2x2x1
jax: 0.10.0
libtpu: 0.0.40
codegen_flags: <defaults>
</compile_context>

<pallas_src>
import functools
from typing import Any, NamedTuple, Tuple

import jax
import jax.numpy as jnp
import numpy as np
from jax import lax
from jax.experimental import pallas as pl
from jax.experimental.pallas import tpu as pltpu

F32 = jnp.float32
BF16 = jnp.bfloat16
EPS = 1e-5

_VMEM_LIMIT = 48 * 1024 * 1024        # safe on v5e/v6e (128 MiB) and v7x (64 MiB)
_MM_BUDGET = 12 * 1024 * 1024         # per-buffer-set matmul tile budget
_EW_BUDGET = 8 * 1024 * 1024          # per-buffer-set elementwise tile budget
_TM_CAP = 32768


def _round_down8(x):
    return max(8, (int(x) // 8) * 8)


def _elu(y):
    # exp() is only evaluated on min(y, 0) so it can never overflow to inf.
    return jnp.where(y > 0.0, y, jnp.exp(jnp.minimum(y, 0.0)) - 1.0)


# ---------------------------------------------------------------------------
# Matmul kernels (bias + optional activation, optionally fused BN statistics)
# ---------------------------------------------------------------------------
def _matmul_kernel(x_ref, w_ref, b_ref, o_ref, *, act):
    y = jnp.dot(x_ref[...], w_ref[...], preferred_element_type=jnp.float32)
    y = y + b_ref[...]
    if act == "relu":
        y = jnp.maximum(y, 0.0)
    elif act == "elu":
        y = _elu(y)
    o_ref[...] = y.astype(o_ref.dtype)


def _matmul_stats_kernel(x_ref, w_ref, b_ref, o_ref, s1_ref, s2_ref, *,
                         act, n_rows, tm):
    i = pl.program_id(0)
    y = jnp.dot(x_ref[...], w_ref[...], preferred_element_type=jnp.float32)
    y = y + b_ref[...]
    if act == "relu":
        y = jnp.maximum(y, 0.0)
    elif act == "elu":
        y = _elu(y)
    o_ref[...] = y.astype(o_ref.dtype)
    rows = i * tm + lax.broadcasted_iota(jnp.int32, (tm, 1), 0)
    ym = jnp.where(rows < n_rows, y, 0.0)
    s1_ref[...] = jnp.sum(ym, axis=0)[None, None, :]
    s2_ref[...] = jnp.sum(ym * ym, axis=0)[None, None, :]


@functools.partial(jax.jit, static_argnames=("act", "stats", "out_dtype"))
def pallas_matmul(x, w, b, act="none", stats=False, out_dtype=F32):
    """out = act(x @ w + b).  x:(M,K)  w:(K,N)  b:(N,).

    If stats=True also returns per-row-block partial column sums / sums of
    squares of the activated output (shape (G,1,N), float32)."""
    M, K = x.shape
    N = w.shape[1]
    xb = jnp.dtype(x.dtype).itemsize
    wb = jnp.dtype(w.dtype).itemsize
    ob = jnp.dtype(out_dtype).itemsize

    TN = N if (stats or N <= 2048) else 2048        # 2048 is a multiple of 128
    const = K * TN * wb + 8 * TN * 4
    denom = K * xb + TN * (4 + ob)                  # f32 intermediate + output
    tm_budget = max(8, (_MM_BUDGET - const) // denom)
    if M <= tm_budget and M <= _TM_CAP:
        TM = M
    else:
        TM = _round_down8(min(tm_budget, _TM_CAP))
    gm = pl.cdiv(M, TM)
    gn = pl.cdiv(N, TN)

    b2 = b.reshape(1, N).astype(F32)

    if stats:
        kern = functools.partial(_matmul_stats_kernel, act=act, n_rows=M, tm=TM)
        return pl.pallas_call(
            kern,
            out_shape=(jax.ShapeDtypeStruct((M, N), out_dtype),
                       jax.ShapeDtypeStruct((gm, 1, N), F32),
                       jax.ShapeDtypeStruct((gm, 1, N), F32)),
            grid=(gm,),
            in_specs=[pl.BlockSpec((TM, K), lambda i: (i, 0)),
                      pl.BlockSpec((K, N), lambda i: (0, 0)),
                      pl.BlockSpec((1, N), lambda i: (0, 0))],
            out_specs=(pl.BlockSpec((TM, N), lambda i: (i, 0)),
                       pl.BlockSpec((1, 1, N), lambda i: (i, 0, 0)),
                       pl.BlockSpec((1, 1, N), lambda i: (i, 0, 0))),
            compiler_params=pltpu.CompilerParams(
                dimension_semantics=("parallel",),
                vmem_limit_bytes=_VMEM_LIMIT),
        )(x, w, b2)

    kern = functools.partial(_matmul_kernel, act=act)
    return pl.pallas_call(
        kern,
        out_shape=jax.ShapeDtypeStruct((M, N), out_dtype),
        grid=(gm, gn),
        in_specs=[pl.BlockSpec((TM, K), lambda i, j: (i, 0)),
                  pl.BlockSpec((K, TN), lambda i, j: (0, j)),
                  pl.BlockSpec((1, TN), lambda i, j: (0, j))],
        out_specs=pl.BlockSpec((TM, TN), lambda i, j: (i, j)),
        compiler_params=pltpu.CompilerParams(
            dimension_semantics=("parallel", "parallel"),
            vmem_limit_bytes=_VMEM_LIMIT),
    )(x, w, b2)


# ---------------------------------------------------------------------------
# Elementwise kernels: stats, bias+ELU+stats, affine+sigmoid
# ---------------------------------------------------------------------------
def _ew_row_tile(n_rows, cols, xbytes):
    denom = cols * (xbytes + 4) + 1
    tm_budget = max(8, _EW_BUDGET // denom)
    if n_rows <= tm_budget and n_rows <= _TM_CAP:
        return n_rows
    return _round_down8(min(tm_budget, _TM_CAP))


def _stats_partial_kernel(x_ref, s1_ref, s2_ref, *, n_rows, tm):
    i = pl.program_id(0)
    x = x_ref[...].astype(jnp.float32)
    rows = i * tm + lax.broadcasted_iota(jnp.int32, (tm, 1), 0)
    xm = jnp.where(rows < n_rows, x, 0.0)
    s1_ref[...] = jnp.sum(xm, axis=0)[None, None, :]
    s2_ref[...] = jnp.sum(xm * xm, axis=0)[None, None, :]


@jax.jit
def pallas_stats(x2d):
    """Per-row-block partial column sums / sums-of-squares (shape (G,1,C))."""
    N, C = x2d.shape
    TM = _ew_row_tile(N, C, jnp.dtype(x2d.dtype).itemsize)
    G = pl.cdiv(N, TM)
    return pl.pallas_call(
        functools.partial(_stats_partial_kernel, n_rows=N, tm=TM),
        out_shape=(jax.ShapeDtypeStruct((G, 1, C), F32),
                   jax.ShapeDtypeStruct((G, 1, C), F32)),
        grid=(G,),
        in_specs=[pl.BlockSpec((TM, C), lambda i: (i, 0))],
        out_specs=(pl.BlockSpec((1, 1, C), lambda i: (i, 0, 0)),
                   pl.BlockSpec((1, 1, C), lambda i: (i, 0, 0))),
        compiler_params=pltpu.CompilerParams(
            dimension_semantics=("parallel",), vmem_limit_bytes=_VMEM_LIMIT),
    )(x2d)


def _bias_elu_stats_kernel(x_ref, b_ref, y_ref, s1_ref, s2_ref, *, n_rows, tm):
    i = pl.program_id(0)
    y = x_ref[...].astype(jnp.float32) + b_ref[...]
    y = _elu(y)
    y_ref[...] = y.astype(y_ref.dtype)
    rows = i * tm + lax.broadcasted_iota(jnp.int32, (tm, 1), 0)
    ym = jnp.where(rows < n_rows, y, 0.0)
    s1_ref[...] = jnp.sum(ym, axis=0)[None, None, :]
    s2_ref[...] = jnp.sum(ym * ym, axis=0)[None, None, :]


@jax.jit
def pallas_bias_elu_stats(x2d, b):
    """y = ELU(x + b) plus per-row-block partial per-channel stats of y."""
    N, C = x2d.shape
    TM = _ew_row_tile(N, C, jnp.dtype(x2d.dtype).itemsize)
    G = pl.cdiv(N, TM)
    return pl.pallas_call(
        functools.partial(_bias_elu_stats_kernel, n_rows=N, tm=TM),
        out_shape=(jax.ShapeDtypeStruct((N, C), x2d.dtype),
                   jax.ShapeDtypeStruct((G, 1, C), F32),
                   jax.ShapeDtypeStruct((G, 1, C), F32)),
        grid=(G,),
        in_specs=[pl.BlockSpec((TM, C), lambda i: (i, 0)),
                  pl.BlockSpec((1, C), lambda i: (0, 0))],
        out_specs=(pl.BlockSpec((TM, C), lambda i: (i, 0)),
                   pl.BlockSpec((1, 1, C), lambda i: (i, 0, 0)),
                   pl.BlockSpec((1, 1, C), lambda i: (i, 0, 0))),
        compiler_params=pltpu.CompilerParams(
            dimension_semantics=("parallel",), vmem_limit_bytes=_VMEM_LIMIT),
    )(x2d, b.reshape(1, C).astype(F32))


def _affine_sigmoid_kernel(x_ref, a_ref, d_ref, o_ref):
    z = x_ref[...].astype(jnp.float32) * a_ref[...] + d_ref[...]
    o_ref[...] = 1.0 / (1.0 + jnp.exp(-z))


@jax.jit
def pallas_affine_sigmoid(x2d, a2, d2):
    """sigmoid(x * a + d), per-column a/d of shape (1, C)."""
    N, C = x2d.shape
    TM = _ew_row_tile(N, C, jnp.dtype(x2d.dtype).itemsize)
    G = pl.cdiv(N, TM)
    return pl.pallas_call(
        _affine_sigmoid_kernel,
        out_shape=jax.ShapeDtypeStruct((N, C), F32),
        grid=(G,),
        in_specs=[pl.BlockSpec((TM, C), lambda i: (i, 0)),
                  pl.BlockSpec((1, C), lambda i: (0, 0)),
                  pl.BlockSpec((1, C), lambda i: (0, 0))],
        out_specs=pl.BlockSpec((TM, C), lambda i: (i, 0)),
        compiler_params=pltpu.CompilerParams(
            dimension_semantics=("parallel",), vmem_limit_bytes=_VMEM_LIMIT),
    )(x2d, a2.astype(F32), d2.astype(F32))


# ---------------------------------------------------------------------------
# ConvTranspose3d (padding=0) = one Pallas matmul + sub-pixel reassembly
# ---------------------------------------------------------------------------
def _phase_reduce(arr, sp_ax, tap_ax, k, s):
    """Reduce the size-k tap axis against the spatial axis into s phases.

    out[..., q, ..., r, ...] = sum_m arr[..., q-m, ..., r+s*m, ...] (valid m)."""
    D = arr.shape[sp_ax]
    ktap = -(-k // s)
    nq = D - 1 + ktap
    pieces = []
    for r in range(s):
        acc = None
        for m in range(ktap):
            kd = r + s * m
            if kd >= k:
                break
            term = lax.index_in_dim(arr, kd, axis=tap_ax, keepdims=False)
            pad = [(0, 0)] * term.ndim
            pad[sp_ax] = (m, nq - D - m)
            term = jnp.pad(term, pad)
            acc = term if acc is None else acc + term
        if acc is None:                       # only possible if k < s
            shape = list(arr.shape)
            del shape[tap_ax]
            shape[sp_ax] = nq
            acc = jnp.zeros(shape, arr.dtype)
        pieces.append(acc)
    return jnp.stack(pieces, axis=tap_ax)


def conv_transpose3d(x, w, b, stride, *, in_scale=None, in_shift=None,
                     act="none", out_dtype=F32):
    """ConvTranspose3d (padding=0) on channels-last x:(B,D,H,W,Cin).

    w:(k,k,k,Cin,Cout), b:(Cout,). If (in_scale, in_shift) is given the
    previous layer's BatchNorm affine is folded in (effective input =
    in_scale * x + in_shift).

    Returns (out, stats):
      * k == stride : out includes conv bias (and ELU if act='elu');
        stats = (per-channel sum, per-channel sum-of-squares, count) of out,
        computed inside the matmul kernel.
      * k != stride : out EXCLUDES conv bias (caller folds it analytically);
        stats is None.
    """
    B, D, H, Wd, Cin = x.shape
    k = w.shape[0]
    Cout = w.shape[-1]
    s = stride
    Do, Ho, Wo = (D - 1) * s + k, (H - 1) * s + k, (Wd - 1) * s + k

    w_eff = w if in_scale is None else w * in_scale.reshape(1, 1, 1, Cin, 1)
    wg = jnp.transpose(w_eff, (3, 0, 1, 2, 4)).reshape(Cin, k ** 3 * Cout)
    xf = x.reshape(B * D * H * Wd, Cin)
    wg = wg.astype(xf.dtype)
    M = xf.shape[0]

    if in_shift is None:
        shift_taps = jnp.zeros((k, k, k, Cout), F32)
    else:
        shift_taps = jnp.einsum("i,dhwio->dhwo", in_shift.astype(F32),
                                w.astype(F32))

    if k == s:
        # Every output element is exactly one matmul contribution + bias, so
        # bias / ELU / BN-statistics are fused into the matmul epilogue and the
        # reassembly is a pure permutation (single reshape + transpose).
        bg = (shift_taps + b.reshape(1, 1, 1, Cout).astype(F32)).reshape(-1)
        y2d, p1, p2 = pallas_matmul(xf, wg, bg, act=act, stats=True,
                                    out_dtype=out_dtype)
        y = y2d.reshape(B, D, H, Wd, k, k, k, Cout)
        y = jnp.transpose(y, (0, 1, 4, 2, 5, 3, 6, 7))
        y = y.reshape(B, Do, Ho, Wo, Cout)
        s1 = jnp.sum(p1, axis=(0, 1)).reshape(k ** 3, Cout).sum(axis=0)
        s2 = jnp.sum(p2, axis=(0, 1)).reshape(k ** 3, Cout).sum(axis=0)
        return y, (s1, s2, float(M) * (k ** 3))

    # General k != s: single matmul over all offsets, then hierarchical
    # per-axis tap reduction into s^3 phases and one interleaving transpose.
    bg = shift_taps.reshape(-1)
    contrib = pallas_matmul(xf, wg, bg, act="none", stats=False,
                            out_dtype=out_dtype)
    arr = contrib.reshape(B, D, H, Wd, k, k, k, Cout)
    arr = _phase_reduce(arr, 1, 4, k, s)
    arr = _phase_reduce(arr, 2, 5, k, s)
    arr = _phase_reduce(arr, 3, 6, k, s)
    ktap = -(-k // s)
    nqd, nqh, nqw = D - 1 + ktap, H - 1 + ktap, Wd - 1 + ktap
    out = jnp.transpose(arr, (0, 1, 4, 2, 5, 3, 6, 7))
    out = out.reshape(B, nqd * s, nqh * s, nqw * s, Cout)
    if (Do, Ho, Wo) != (nqd * s, nqh * s, nqw * s):
        out = out[:, :Do, :Ho, :Wo, :]
    return out, None


# ---------------------------------------------------------------------------
# Model definition: parameters + forward pass
# ---------------------------------------------------------------------------
class ConvCfg(NamedTuple):
    name: str
    cin: int
    cout: int
    k: int
    s: int
    elu: bool
    out_dtype: Any


class ModelCfg(NamedTuple):
    in_features: int
    fc1_out: int
    conv: Tuple[ConvCfg, ...]


# Full-fidelity configuration matching the PyTorch module exactly.
FULL_CFG = ModelCfg(
    in_features=32, fc1_out=1024,
    conv=(
        ConvCfg("c2", 512, 512, 3, 2, True,  F32),
        ConvCfg("c3", 512, 512, 2, 2, True,  F32),
        ConvCfg("c4", 512, 256, 2, 2, True,  BF16),
        ConvCfg("c5", 256,  64, 4, 3, False, BF16),
        ConvCfg("c6",  64,  32, 3, 3, False, BF16),
        ConvCfg("c7",  32,   1, 4, 2, False, BF16),
    ))


def init_params(key, cfg):
    p = {}
    fc2_out = cfg.conv[0].cin * 27
    keys = iter(jax.random.split(key, 4 + 2 * len(cfg.conv)))
    p["fc1_w"] = jax.random.normal(next(keys), (cfg.in_features, cfg.fc1_out),
                                   F32) / np.sqrt(cfg.in_features)
    p["fc1_b"] = 0.01 * jax.random.normal(next(keys), (cfg.fc1_out,), F32)
    p["fc2_w"] = jax.random.normal(next(keys), (cfg.fc1_out, fc2_out),
                                   F32) / np.sqrt(cfg.fc1_out)
    p["fc2_b"] = 0.01 * jax.random.normal(next(keys), (fc2_out,), F32)
    for lc in cfg.conv:
        fan = float(lc.cin * lc.k ** 3)
        p[lc.name + "_w"] = jax.random.normal(
            next(keys), (lc.k, lc.k, lc.k, lc.cin, lc.cout), F32) / np.sqrt(fan)
        p[lc.name + "_b"] = 0.01 * jax.random.normal(next(keys), (lc.cout,), F32)
        p[lc.name + "_gamma"] = jnp.ones((lc.cout,), F32)
        p[lc.name + "_beta"] = jnp.zeros((lc.cout,), F32)
    return p


def _bn_affine(s1, s2, count, gamma, beta):
    mean = s1 / count
    var = jnp.maximum(s2 / count - mean * mean, 0.0)   # biased var (training BN)
    a = gamma / jnp.sqrt(var + EPS)
    return a, beta - a * mean


def forward(x, params, cfg):
    B = x.shape[0]
    h = pallas_matmul(x.astype(F32), params["fc1_w"], params["fc1_b"],
                      act="relu", stats=False, out_dtype=F32)
    h = pallas_matmul(h, params["fc2_w"], params["fc2_b"],
                      act="relu", stats=False, out_dtype=F32)
    c0 = cfg.conv[0].cin
    # view(-1, C0, 3, 3, 3) in NCDHW -> channels-last (B, 3, 3, 3, C0)
    cur = h.reshape(B, c0, 3, 3, 3).transpose(0, 2, 3, 4, 1)

    scale = None
    shift = None
    for lc in cfg.conv:
        w = params[lc.name + "_w"]
        b = params[lc.name + "_b"].astype(F32)
        gamma = params[lc.name + "_gamma"]
        beta = params[lc.name + "_beta"]
        fused = (lc.k == lc.s)
        y, st = conv_transpose3d(
            cur, w, b, lc.s, in_scale=scale, in_shift=shift,
            act=("elu" if (fused and lc.elu) else "none"),
            out_dtype=lc.out_dtype)
        Bc, Dc, Hc, Wc, Cc = y.shape
        n_rows = Bc * Dc * Hc * Wc

        if st is not None:                       # bias/ELU/stats fused in matmul
            s1, s2, count = st
            stored = y
            pend = jnp.zeros((Cc,), F32)
        elif lc.elu:                             # ELU layer, k != s (c2)
            y2d, p1, p2 = pallas_bias_elu_stats(y.reshape(n_rows, Cc), b)
            stored = y2d.reshape(Bc, Dc, Hc, Wc, Cc)
            s1 = jnp.sum(p1, axis=(0, 1))
            s2 = jnp.sum(p2, axis=(0, 1))
            count = float(n_rows)
            pend = jnp.zeros((Cc,), F32)
        else:                                    # no-ELU, k != s (c5, c7)
            if Cc == 1:
                # fold W into lanes so the stats pass is lane-dense
                p1, p2 = pallas_stats(y.reshape(Bc * Dc * Hc, Wc))
                raw1 = jnp.sum(p1).reshape(1)
                raw2 = jnp.sum(p2).reshape(1)
            else:
                p1, p2 = pallas_stats(y.reshape(n_rows, Cc))
                raw1 = jnp.sum(p1, axis=(0, 1))
                raw2 = jnp.sum(p2, axis=(0, 1))
            count = float(n_rows)
            # conv bias is not materialized; adjust statistics analytically
            s1 = raw1 + count * b
            s2 = raw2 + 2.0 * b * raw1 + count * b * b
            stored = y
            pend = b

        bn_a, bn_d = _bn_affine(s1, s2, count, gamma, beta)
        scale = bn_a
        shift = bn_d + bn_a * pend               # fold un-materialized bias
        cur = stored

    # final layer: apply last BatchNorm affine + sigmoid (C == 1 in the spec)
    Bc, Dc, Hc, Wc, Cc = cur.shape
    if Cc == 1:
        x2 = cur.reshape(Bc * Dc * Hc, Wc)       # W folded into lanes
        a2 = jnp.broadcast_to(scale.reshape(1, 1), (1, Wc))
        d2 = jnp.broadcast_to(shift.reshape(1, 1), (1, Wc))
        out = pallas_affine_sigmoid(x2, a2, d2).reshape(Bc, Dc, Hc, Wc)
        return out.reshape(Bc, 1, Dc, Hc, Wc)    # back to NCDHW
    x2 = cur.reshape(-1, Cc)
    out = pallas_affine_sigmoid(x2, scale.reshape(1, Cc), shift.reshape(1, Cc))
    out = out.reshape(Bc, Dc, Hc, Wc, Cc)
    return jnp.transpose(out, (0, 4, 1, 2, 3))


# ---------------------------------------------------------------------------
# Small brute-force self-test of the Pallas-backed ConvTranspose3d
# ---------------------------------------------------------------------------
def _ref_convt3d(x, w, s, in_scale, in_shift):
    x = np.asarray(x, np.float64) * np.asarray(in_scale, np.float64) + \
        np.asarray(in_shift, np.float64)
    w = np.asarray(w, np.float64)
    B, D, H, W, Cin = x.shape
    k = w.shape[0]
    Cout = w.shape[-1]
    out = np.zeros((B, (D - 1) * s + k, (H - 1) * s + k, (W - 1) * s + k, Cout),
                   np.float64)
    for b_ in range(B):
        for d in range(D):
            for h in range(H):
                for wi in range(W):
                    v = x[b_, d, h, wi]
                    for kd in range(k):
                        for kh in range(k):
                            for kw in range(k):
                                out[b_, d * s + kd, h * s + kh,
                                    wi * s + kw] += v @ w[kd, kh, kw]
    return out


def _self_test():
    key = jax.random.PRNGKey(42)
    for (k, s) in ((3, 2), (2, 2), (4, 2)):
        keys = jax.random.split(key, 6)
        key = keys[0]
        B, D, Cin, Cout = 1, 2, 4, 8
        x = jax.random.normal(keys[1], (B, D, D, D, Cin), F32)
        w = jax.random.normal(keys[2], (k, k, k, Cin, Cout), F32)
        b = jax.random.normal(keys[3], (Cout,), F32)
        sc = 1.0 + 0.5 * jax.random.normal(keys[4], (Cin,), F32)
        sh = 0.5 * jax.random.normal(keys[5], (Cin,), F32)
        got, st = conv_transpose3d(x, w, b, s, in_scale=sc, in_shift=sh,
                                   act="none", out_dtype=F32)
        ref = _ref_convt3d(x, w, s, sc, sh)
        if st is not None:                       # k == s path includes the bias
            ref = ref + np.asarray(b, np.float64)
        np.testing.assert_allclose(np.asarray(got), ref, rtol=2e-3, atol=2e-3)
        if st is not None:
            s1, s2, cnt = st
            np.testing.assert_allclose(np.asarray(s1),
                                       ref.reshape(-1, Cout).sum(0),
                                       rtol=2e-3, atol=2e-3)
            assert cnt == ref.size / Cout


if __name__ == "__main__":
    _self_test()

    # Small demo configuration: same layer structure (2x fc+relu, 3x
    # ConvT+ELU+BN, 3x ConvT+BN, sigmoid) with reduced channel widths and
    # reduced upsampling so the demo runs quickly.  Use FULL_CFG for the exact
    # PyTorch shapes (in_channels 512/512/256/64/32/1, output 512^3).
    TEST_CFG = ModelCfg(
        in_features=32, fc1_out=64,
        conv=(
            ConvCfg("c2", 32, 32, 3, 2, True,  F32),   # 3  -> 7
            ConvCfg("c3", 32, 32, 2, 2, True,  F32),   # 7  -> 14
            ConvCfg("c4", 32, 16, 2, 2, True,  F32),   # 14 -> 28
            ConvCfg("c5", 16,  8, 4, 1, False, BF16),  # 28 -> 31
            ConvCfg("c6",  8,  4, 3, 3, False, BF16),  # 31 -> 93
            ConvCfg("c7",  4,  1, 4, 2, False, BF16),  # 93 -> 188
        ))

    key = jax.random.PRNGKey(0)
    pkey, xkey = jax.random.split(key)
    params = init_params(pkey, TEST_CFG)
    B = 2
    x = jax.random.normal(xkey, (B, TEST_CFG.in_features), F32)

    out = jax.block_until_ready(forward(x, params, TEST_CFG))

    d = 3
    for lc in TEST_CFG.conv:
        d = (d - 1) * lc.s + lc.k
    assert out.shape == (B, 1, d, d, d), out.shape
    assert out.dtype == jnp.float32
    assert bool(jnp.all(jnp.isfinite(out)))
    assert bool(jnp.all((out >= 0.0) & (out <= 1.0)))
    print("KERNEL_OK")
</pallas_src>

<mosaic_0001>
module attributes {stable_mosaic.version = 11 : i64} {
  func.func @_matmul_kernel(%arg0: i32, %arg1: i32, %arg2: memref<8x4xf32, #tpu.memory_space<vmem>>, %arg3: memref<4x216xf32, #tpu.memory_space<vmem>>, %arg4: memref<1x216xf32, #tpu.memory_space<vmem>>, %arg5: memref<8x216xf32, #tpu.memory_space<vmem>>) attributes {dimension_semantics = [#tpu.dimension_semantics<parallel>, #tpu.dimension_semantics<parallel>], iteration_bounds = array<i64: 1, 1>, scalar_prefetch = 0 : i64, scratch_operands = 0 : i64, tpu.core_type = #tpu.core_type<tc>, window_params = [{transform_indices = @transform_0, window_bounds = array<i64: 8, 4>}, {transform_indices = @transform_1, window_bounds = array<i64: 4, 216>}, {transform_indices = @transform_2, window_bounds = array<i64: 1, 216>}, {transform_indices = @transform_3, window_bounds = array<i64: 8, 216>}]} {
    %c0 = arith.constant 0 : index
    %c0_0 = arith.constant 0 : index
    %0 = vector.load %arg2[%c0, %c0_0] : memref<8x4xf32, #tpu.memory_space<vmem>>, vector<8x4xf32>
    %c0_1 = arith.constant 0 : index
    %c0_2 = arith.constant 0 : index
    %1 = vector.load %arg3[%c0_1, %c0_2] : memref<4x216xf32, #tpu.memory_space<vmem>>, vector<4x216xf32>
    %cst = arith.constant dense<0.000000e+00> : vector<8x216xf32>
    %2 = tpu.matmul %0, %1, %cst {dimension_numbers = #tpu.dot_dimension_numbers<[1], [0], [0], [1], [0, 0, 1, 1], [], []>} : vector<8x4xf32>, vector<4x216xf32>, vector<8x216xf32> -> vector<8x216xf32>
    %c0_3 = arith.constant 0 : index
    %c0_4 = arith.constant 0 : index
    %3 = vector.load %arg4[%c0_3, %c0_4] : memref<1x216xf32, #tpu.memory_space<vmem>>, vector<1x216xf32>
    %4 = vector.broadcast %3 : vector<1x216xf32> to vector<8x216xf32>
    %5 = arith.addf %2, %4 : vector<8x216xf32>
    %c0_5 = arith.constant 0 : index
    %c0_6 = arith.constant 0 : index
    %6 = vector.load %arg5[%c0_5, %c0_6] : memref<8x216xf32, #tpu.memory_space<vmem>>, vector<8x216xf32>
    tpu.vector_store %arg5[%c0_5, %c0_6], %5 {strides = array<i32>} : memref<8x216xf32, #tpu.memory_space<vmem>>, vector<8x216xf32>,
    return
  }
  func.func @transform_0(%arg0: i32, %arg1: i32) -> (i32, i32) {
    %c0_i32 = arith.constant 0 : i32
    %c0_i32_0 = arith.constant 0 : i32
    return %arg0, %c0_i32 : i32, i32
  }
  func.func @transform_1(%arg0: i32, %arg1: i32) -> (i32, i32) {
    %c0_i32 = arith.constant 0 : i32
    %c0_i32_0 = arith.constant 0 : i32
    return %c0_i32, %arg1 : i32, i32
  }
  func.func @transform_2(%arg0: i32, %arg1: i32) -> (i32, i32) {
    %c0_i32 = arith.constant 0 : i32
    %c0_i32_0 = arith.constant 0 : i32
    return %c0_i32, %arg1 : i32, i32
  }
  func.func @transform_3(%arg0: i32, %arg1: i32) -> (i32, i32) {
    %c0_i32 = arith.constant 0 : i32
    return %arg0, %arg1 : i32, i32
  }
}

</mosaic_0001>

<llo_original>
// kernel: pallas_matmul.1
$region0: #{pallas_matmul.1}
  #allocation0 [shape = 'u32[]', space=smem, size = 0x4, offset = 0x4, fixed_abs, tag = 'smem constant byte address 0x4 - core index']
  #allocation1 [shape = 'u32[144,128]{1,0:T(1,128)}', space=vmem, size = 0x12000, scoped, tag = 'internal scratch']
  %s0 = inlined_call_operand.vmem [shape: f32[8,4], index: 0, kind: input, shape index: {}]
  %s1 = inlined_call_operand.vmem [shape: f32[4,216], index: 1, kind: input, shape index: {}]
  %s2 = inlined_call_operand.vmem [shape: f32[1,216], index: 2, kind: input, shape index: {}]
  %s3 = inlined_call_operand.hbm [shape: f32[8,216], index: 3, kind: output, shape index: {}]
  %s4 = sld [smem:[#allocation0]]
  $region22: #{pallas_matmul.1} parent=0
    _
  %s6 = ssub.s32 1, %s4
  %s7 = scalar_select 0, %s6, %s4
  $region1: #{pallas_matmul.1} parent=0
    #allocation2 [shape = 'u8[8192]{0}', space=vmem, size = 0x2000, scoped, tag = 'output window, operand 0, single buffered']
    #allocation3 [shape = 's32[1]{0}', space=sflag, size = 0x4, scoped, tag = 'scoped memory for pallas_matmul.1']
    %8 = vsyncpa [#allocation3], 0
    // Predicated region
    $region2: #{pallas_matmul.1} parent=1 // pred_check
      _
    $region3: #{pallas_matmul.1} parent=1 // pred_check_branch
      %10 = sbr.rel (0) target = $region5
    $region4: #{pallas_matmul.1} parent=1 // pred_region
      _
    $region5: #{pallas_matmul.1} parent=1 // pred_fallthru
      _
    // Predicated region
    $region6: #{pallas_matmul.1} parent=1 // pred_check
      _
    $region7: #{pallas_matmul.1} parent=1 // pred_check_branch
      %12 = sbr.rel (0) target = $region9
    $region8: #{pallas_matmul.1} parent=1 // pred_region
      _
    $region9: #{pallas_matmul.1} parent=1 // pred_fallthru
      _
    // Predicated region
    $region10: #{pallas_matmul.1} parent=1 // pred_check
      _
    $region11: #{pallas_matmul.1} parent=1 // pred_check_branch
      %14 = sbr.rel (0) target = $region13
    $region12: #{pallas_matmul.1} parent=1 // pred_region
      _
    $region13: #{pallas_matmul.1} parent=1 // pred_fallthru
      _
    %v15 = vld [vmem:[%s0] sm:$0xff]
    %v16 = vld [vmem:[%s1] sm:$0xff]
    %v17 = vld [vmem:[%s2] sm:$0x3]
    %v19 = vlaneseq
    %v20 = vshrl.u32 %v19, 7
    %v21 = vsub.s32 0, %v20
    %v22 = vrot.slane %v17, %v21
    %v23 = vlaneseq
    %v24 = vshrl.u32 %v23, 7
    %v25 = vsub.s32 1, %v24
    %v26 = vrot.slane %v17, %v25
    %v30 = vcombine.high %v16, %v16
    %vm31 = vcmask 31744
    %v33 = vsel %vm31, %v15, 0
    %vm35 = vcmask 1043456
    %v36 = vsel %vm35, %v16, 0
    %v38 = vsel %vm35, %v30, 0
    %40 = vmatprep.subr.mxu0 0.0
    %41 = vmatpush1.msra.mxu0 0.0
    %42 = vmatprep.subr.mxu0 0.0
    %43 = vmatpush1.msra.mxu0 0.0
    %44 = vmatprep.subr.mxu0 0.0
    %45 = vmatpush1.msra.mxu0 0.0
    %46 = vmatprep.subr.mxu0 0.0
    %47 = vmatpush1.msra.mxu0 0.0
    %48 = vmatprep.subr.mxu0 0.0
    %49 = vmatpush1.msra.mxu0 0.0
    %50 = vmatprep.subr.mxu0 0.0
    %51 = vmatpush1.msra.mxu0 0.0
    %52 = vmatprep.subr.mxu0 0.0
    %53 = vmatpush1.msra.mxu0 0.0
    %54 = vmatprep.subr.mxu0 0.0
    %55 = vmatpush1.msra.mxu0 0.0
    %56 = vmatprep.subr.mxu0 0.0
    %57 = vmatpush1.msra.mxu0 0.0
    %58 = vmatprep.subr.mxu0 0.0
    %59 = vmatpush1.msra.mxu0 0.0
    %60 = vmatprep.subr.mxu0 0.0
    %61 = vmatpush1.msra.mxu0 0.0
    %62 = vmatprep.subr.mxu0 0.0
    %63 = vmatpush1.msra.mxu0 0.0
    %64 = vmatprep.subr.mxu0 0.0
    %65 = vmatpush1.msra.mxu0 0.0
    %66 = vmatprep.subr.mxu0 0.0
    %67 = vmatpush1.msra.mxu0 0.0
    %68 = vmatprep.subr.mxu0 0.0
    %69 = vmatpush1.msra.mxu0 0.0
    %70 = vmatprep.subr.mxu0 %v38
    %71 = vmatpush1.msra.mxu0 %v36
    %72 = vmatprep.subr.mxu0 0.0
    %73 = vmatpush2.msra.mxu0 0.0
    %74 = vmatprep.subr.mxu0 0.0
    %75 = vmatpush2.msra.mxu0 0.0
    %76 = vmatprep.subr.mxu0 0.0
    %77 = vmatpush2.msra.mxu0 0.0
    %78 = vmatprep.subr.mxu0 0.0
    %79 = vmatpush2.msra.mxu0 0.0
    %80 = vmatprep.subr.mxu0 0.0
    %81 = vmatpush2.msra.mxu0 0.0
    %82 = vmatprep.subr.mxu0 0.0
    %83 = vmatpush2.msra.mxu0 0.0
    %84 = vmatprep.subr.mxu0 0.0
    %85 = vmatpush2.msra.mxu0 0.0
    %86 = vmatprep.subr.mxu0 0.0
    %87 = vmatpush2.msra.mxu0 0.0
    %88 = vmatprep.subr.mxu0 0.0
    %89 = vmatpush2.msra.mxu0 0.0
    %90 = vmatprep.subr.mxu0 0.0
    %91 = vmatpush2.msra.mxu0 0.0
    %92 = vmatprep.subr.mxu0 0.0
    %93 = vmatpush2.msra.mxu0 0.0
    %94 = vmatprep.subr.mxu0 0.0
    %95 = vmatpush2.msra.mxu0 0.0
    %96 = vmatprep.subr.mxu0 0.0
    %97 = vmatpush2.msra.mxu0 0.0
    %98 = vmatprep.subr.mxu0 0.0
    %99 = vmatpush2.msra.mxu0 0.0
    %100 = vmatprep.subr.mxu0 0.0
    %101 = vmatpush2.msra.mxu0 0.0
    %102 = vmatprep.subr.mxu0 0.0
    %103 = vmatpush2.msra.mxu0 0.0
    %104 = vmatprep.mubr.f32.mxu0 0.0
    %105 = vmatmul.mubr.f32.gmra.mxu0 %v33
    %v106 = vpop.f32.mrf.mxu0
    %v107 = vadd.f32 %v22, %v106
    %v108 = vpop.f32.mrf.mxu0
    %v109 = vadd.f32 %v26, %v108
    %110 = vdwg.mxu0
    %111 = vst [vmem:[#allocation2] sm:$0xff] %v107
    %vm112 = vcmask 719872
    %113 = vst.msk [vmem:[#allocation2 + $0x8] sm:$0xff] %vm112, %v109
    // Predicated region
    $region14: #{pallas_matmul.1} parent=1 // pred_check
      _
    $region15: #{pallas_matmul.1} parent=1 // pred_check_branch
      %115 = sbr.rel (0) target = $region17
    $region16: #{pallas_matmul.1} parent=1 // pred_region
      %s117 = ssub.s32 256, 256
      %118 = vsyncadd [#allocation3], %s117
      %s120 = sshll.u32 [#allocation2], 4
      %s121 = int_to_ptr.vmem [resolvable:$true] %s120
      %123 = dma.vmem_to_hbm [thread:$0]  %s121, 256, %s3, [#allocation3]
    $region17: #{pallas_matmul.1} parent=1 // pred_fallthru
      _
    // Predicated region
    $region18: #{pallas_matmul.1} parent=1 // pred_check
      _
    $region19: #{pallas_matmul.1} parent=1 // pred_check_branch
      %125 = sbr.rel (0) target = $region21
    $region20: #{pallas_matmul.1} parent=1 // pred_region
      %126 = dma.done [#allocation3], 256
    $region21: #{pallas_matmul.1} parent=1 // pred_fallthru
      _
    %127 = vsyncpa [#allocation3], 1

</llo_original>
